<compile_context>
chip_gen: v7x
topology: tpu7x:2x2x1
jax: 0.10.0
libtpu: 0.0.40
codegen_flags: <defaults>
</compile_context>

<pallas_src>
import jax
import jax.numpy as jnp
from jax.experimental import pallas as pl
from jax.experimental.pallas import tpu as pltpu


def _round_up(v, m):
    return (v + m - 1) // m * m


def _vmem_capacity_bytes():
    try:
        return int(pltpu.get_tpu_info().vmem_capacity_bytes)
    except Exception:
        return 64 << 20  # conservative default (v7x-sized VMEM)


def _decoder_kernel(x_ref, w1_ref, b1_ref, w2_ref, b2_ref, w3_ref, b3_ref, out_ref):
    """relu(relu(x@W1+b1)@W2+b2) @ W3[:, n-tile] + b3[n-tile] on one (rows, N) tile.

    MXU inputs are bf16 (weight dtype), accumulation in f32; bias + ReLU run in
    f32 on the VPU.  The first two (CxC) layers are cheap and recomputed per
    N tile; weight refs with constant index maps stay VMEM-resident.
    """
    cdt = w1_ref.dtype
    x = x_ref[...].astype(cdt)  # no-op: wrapper already feeds bf16

    h = jnp.dot(x, w1_ref[...], preferred_element_type=jnp.float32)
    h = jnp.maximum(h + b1_ref[...], 0.0)

    h = jnp.dot(h.astype(cdt), w2_ref[...], preferred_element_type=jnp.float32)
    h = jnp.maximum(h + b2_ref[...], 0.0)

    y = jnp.dot(h.astype(cdt), w3_ref[...], preferred_element_type=jnp.float32)
    y = y + b3_ref[...]
    out_ref[...] = y.astype(out_ref.dtype)


def simple_decoder_forward(x, kernel_params, num_points, *, tile_m=None,
                           out_dtype=jnp.float32):
    """x: (B, C, L) float32 (NCL, like the PyTorch Conv1d input).
    kernel_params from prepare_kernel_params().  Returns (B*L, num_points, 3)."""
    w1, b1, w2, b2, w3, b3 = kernel_params
    B, C, L = x.shape
    M = B * L
    out_ch = num_points * 3
    C_pad = w1.shape[0]
    out_ch_p = w3.shape[1]
    cdt = w1.dtype

    # Guard against raw (un-prepared) params silently changing the slicing below.
    assert C_pad >= C and C_pad % 128 == 0, "run prepare_kernel_params() first"
    assert w1.shape == (C_pad, C_pad) and w2.shape == (C_pad, C_pad)
    assert out_ch_p >= out_ch and (out_ch_p == out_ch or out_ch_p % 128 == 0)

    # NCL -> (M, C) rows, cast to the MXU compute dtype in the same pass.
    if L == 1:
        xm = x.reshape(B, C).astype(cdt)
    else:
        # TODO(synk): fold this NCL->NLC transpose into the kernel (XLU slot);
        # for now only the bf16 cast is fused, so the extra HBM pass is half-width.
        xm = jnp.transpose(x, (0, 2, 1)).reshape(M, C).astype(cdt)

    in_isz = jnp.dtype(cdt).itemsize
    out_isz = jnp.dtype(out_dtype).itemsize

    # ----- tile sizes ---------------------------------------------------------
    vmem_cap = _vmem_capacity_bytes()
    big_vmem = vmem_cap >= (96 << 20)        # v5e/v6e: 128 MiB; v7x: 64 MiB
    if tile_m is None:
        tile_m = 1024 if big_vmem else 512
    tile_budget = (32 << 20) if big_vmem else (16 << 20)
    # per-row VMEM: 2x bf16 input buffers + 2x output buffers + f32 intermediates.
    per_row_bytes = (2 * C_pad * in_isz
                     + 2 * out_ch_p * out_isz
                     + 4 * (2 * C_pad + out_ch_p))
    max_tm = max(8, (tile_budget // per_row_bytes) // 8 * 8)
    tm_cap = min(tile_m, max_tm)
    if tm_cap >= 256:
        tm_cap = tm_cap // 256 * 256          # keep MXU M-dim 256-aligned (v6e/v7x)
    tm = max(8, min(tm_cap, _round_up(M, 8)) // 8 * 8)
    M_pad = _round_up(M, tm)
    gm = M_pad // tm

    # N-tile the last layer only when the row grid cannot feed both v7x TCs.
    if gm < 2 and out_ch_p >= 512 and out_ch_p % 256 == 0:
        tn = 512 if (out_ch_p >= 1024 and out_ch_p % 512 == 0) else 256
    else:
        tn = out_ch_p
    gn = out_ch_p // tn

    # Zero-pad rows / channels (padded channels stay 0 through ReLU and the zero
    # K-rows of W2/W3; padded rows are sliced off below).
    if M_pad != M or C_pad != C:
        xm = jnp.pad(xm, ((0, M_pad - M), (0, C_pad - C)))

    # ----- VMEM / cost bookkeeping -------------------------------------------
    x_buf = 2 * tm * C_pad * in_isz                       # double-buffered input
    out_buf = 2 * tm * tn * out_isz                       # double-buffered output
    w12_buf = 2 * C_pad * C_pad * in_isz + 2 * C_pad * 4  # single-buffered weights
    w3_bufs = 1 if gn == 1 else 2
    w3_buf = w3_bufs * (C_pad * tn * in_isz + tn * 4)
    scratch = tm * (2 * C_pad + tn) * 4 + (256 << 10)     # f32 h1/h2/y temporaries
    requested = int(1.3 * (x_buf + out_buf + w12_buf + w3_buf + scratch))
    cap_req = (64 << 20) if big_vmem else (40 << 20)
    vmem_bytes = int(min(cap_req, max(16 << 20, requested)))

    weight_hbm = sum(int(a.size) * a.dtype.itemsize for a in kernel_params)
    flops = 2 * M_pad * (2 * C_pad * C_pad * gn + C_pad * out_ch_p)
    bytes_accessed = (M_pad * C_pad * in_isz
                      + M_pad * out_ch_p * out_isz
                      + weight_hbm)
    cost = pl.CostEstimate(flops=int(flops), transcendentals=0,
                           bytes_accessed=int(bytes_accessed))

    # ----- pallas_call --------------------------------------------------------
    def build_call(single_buffer_resident):
        def spec(shape, index_map, *, resident=False):
            if resident and single_buffer_resident:
                # Grid-invariant operand: one VMEM copy instead of two.
                return pl.BlockSpec(shape, index_map, pipeline_mode=pl.Buffered(1))
            return pl.BlockSpec(shape, index_map)

        w3_invariant = (gn == 1)
        in_specs = [
            spec((tm, C_pad), lambda i, j: (i, 0)),
            spec((C_pad, C_pad), lambda i, j: (0, 0), resident=True),
            spec((1, C_pad), lambda i, j: (0, 0), resident=True),
            spec((C_pad, C_pad), lambda i, j: (0, 0), resident=True),
            spec((1, C_pad), lambda i, j: (0, 0), resident=True),
            spec((C_pad, tn), lambda i, j: (0, j), resident=w3_invariant),
            spec((1, tn), lambda i, j: (0, j), resident=w3_invariant),
        ]
        return pl.pallas_call(
            _decoder_kernel,
            out_shape=jax.ShapeDtypeStruct((M_pad, out_ch_p), out_dtype),
            grid=(gm, gn),
            in_specs=in_specs,
            out_specs=pl.BlockSpec((tm, tn), lambda i, j: (i, j)),
            compiler_params=pltpu.CompilerParams(
                dimension_semantics=("parallel", "parallel"),
                vmem_limit_bytes=vmem_bytes,
            ),
            cost_estimate=cost,
        )

    try:
        out_flat = build_call(True)(xm, w1, b1, w2, b2, w3, b3)
    except Exception:
        # Fallback for JAX versions without BlockSpec pipeline_mode / Buffered(1).
        out_flat = build_call(False)(xm, w1, b1, w2, b2, w3, b3)

    # Strip row padding and lane padding.
    out_flat = out_flat[:M, :out_ch]

    if L == 1:
        # (B, out_ch) -> (B, num_points, 3): identical memory order to PyTorch.
        return out_flat.reshape(B, num_points, 3)
    # General L: rebuild the NCL conv output, then apply PyTorch's reshape (which
    # interleaves channels and length -- matches the reference exactly).
    y_ncl = jnp.transpose(out_flat.reshape(B, L, out_ch), (0, 2, 1))
    return y_ncl.reshape(-1, num_points, 3)


def init_params(key, feat_dims, num_points, dtype=jnp.float32):
    """Deterministic synthetic parameters (f32 'master' weights).
    PyTorch Conv1d weight is (C_out, C_in, 1); we store the transposed (C_in, C_out)."""
    out_ch = num_points * 3
    ks = jax.random.split(key, 6)
    scale = 0.05
    w1 = scale * jax.random.normal(ks[0], (feat_dims, feat_dims), dtype)
    b1 = scale * jax.random.normal(ks[1], (1, feat_dims), dtype)
    w2 = scale * jax.random.normal(ks[2], (feat_dims, feat_dims), dtype)
    b2 = scale * jax.random.normal(ks[3], (1, feat_dims), dtype)
    w3 = scale * jax.random.normal(ks[4], (feat_dims, out_ch), dtype)
    b3 = scale * jax.random.normal(ks[5], (1, out_ch), dtype)
    return (w1, b1, w2, b2, w3, b3)


def prepare_kernel_params(params, compute_dtype=jnp.bfloat16, lane=128):
    """Zero-pad feat_dims to a multiple of 128 (full lane / MXU-contraction
    utilization even for small channel counts), lane-pad the last layer only
    when out_ch is large enough that unmasked stores beat the extra HBM write
    bytes, and cast weights to the MXU dtype (biases stay f32 for the VPU)."""
    w1, b1, w2, b2, w3, b3 = params
    C = w1.shape[0]
    out_ch = w3.shape[1]
    C_pad = _round_up(C, lane)
    # Below ~96 channels the 128-lane padding writes >1.3x the needed bytes,
    # which loses on mem-bound parts; keep the exact width there.
    if out_ch % lane == 0 or out_ch >= 96:
        out_ch_p = _round_up(out_ch, lane)
    else:
        out_ch_p = out_ch

    def pad2(a, rows, cols):
        return jnp.pad(a, ((0, rows - a.shape[0]), (0, cols - a.shape[1])))

    return (
        pad2(w1, C_pad, C_pad).astype(compute_dtype),
        pad2(b1, 1, C_pad).astype(jnp.float32),
        pad2(w2, C_pad, C_pad).astype(compute_dtype),
        pad2(b2, 1, C_pad).astype(jnp.float32),
        pad2(w3, C_pad, out_ch_p).astype(compute_dtype),
        pad2(b3, 1, out_ch_p).astype(jnp.float32),
    )


def _reference_forward(x, params, num_points):
    """Plain-JAX f32 reference mirroring the PyTorch module."""
    w1, b1, w2, b2, w3, b3 = params
    B, C, L = x.shape
    xm = jnp.transpose(x, (0, 2, 1)).reshape(B * L, C)
    h = jnp.maximum(xm @ w1 + b1, 0.0)
    h = jnp.maximum(h @ w2 + b2, 0.0)
    y = h @ w3 + b3
    y_ncl = jnp.transpose(y.reshape(B, L, num_points * 3), (0, 2, 1))
    return y_ncl.reshape(-1, num_points, 3)


if __name__ == "__main__":
    key = jax.random.PRNGKey(0)

    def run_case(B, feat_dims, L, num_points, out_dtype, sub):
        kx, kp = jax.random.split(jax.random.fold_in(key, sub))
        x = jax.random.normal(kx, (B, feat_dims, L), jnp.float32)
        params_f32 = init_params(kp, feat_dims, num_points)
        kparams = prepare_kernel_params(params_f32)
        out = simple_decoder_forward(x, kparams, num_points, out_dtype=out_dtype)
        out = jax.block_until_ready(out)
        ref = _reference_forward(x, params_f32, num_points)
        assert out.shape == (B * L, num_points, 3), (out.shape, (B * L, num_points, 3))
        # bf16 MXU inputs with f32 accumulation -> widened tolerance vs f32 reference.
        ok = jnp.allclose(out.astype(jnp.float32), ref, atol=2e-2, rtol=2e-2)
        assert ok, f"mismatch vs reference (B={B}, C={feat_dims}, L={L}, m={num_points})"

    # Global-feature case (L=1), tiny channels: exercises channel padding to 128
    # and the exact-width (unpadded) small-out_ch output path.
    run_case(B=2, feat_dims=32, L=1, num_points=8, out_dtype=jnp.float32, sub=0)
    # Larger out_ch with tiny batch: exercises the N-tiled (2-TC) grid and the
    # bf16 output option.
    run_case(B=2, feat_dims=128, L=1, num_points=256, out_dtype=jnp.bfloat16, sub=1)
    # L > 1: exercises the NCL transpose path and PyTorch's interleaving reshape.
    run_case(B=2, feat_dims=32, L=4, num_points=8, out_dtype=jnp.float32, sub=2)

    print("KERNEL_OK")
</pallas_src>

<mosaic_0001>
module attributes {stable_mosaic.version = 11 : i64} {
  func.func @_decoder_kernel(%arg0: i32, %arg1: i32, %arg2: memref<8x128xbf16, #tpu.memory_space<vmem>>, %arg3: memref<128x128xbf16, #tpu.memory_space<vmem>>, %arg4: memref<1x128xf32, #tpu.memory_space<vmem>>, %arg5: memref<128x128xbf16, #tpu.memory_space<vmem>>, %arg6: memref<1x128xf32, #tpu.memory_space<vmem>>, %arg7: memref<128x24xbf16, #tpu.memory_space<vmem>>, %arg8: memref<1x24xf32, #tpu.memory_space<vmem>>, %arg9: memref<8x24xf32, #tpu.memory_space<vmem>>) attributes {dimension_semantics = [#tpu.dimension_semantics<parallel>, #tpu.dimension_semantics<parallel>], iteration_bounds = array<i64: 1, 1>, scalar_prefetch = 0 : i64, scratch_operands = 0 : i64, tpu.core_type = #tpu.core_type<tc>, window_params = [{transform_indices = @transform_0, window_bounds = array<i64: 8, 128>}, {pipeline_mode = #tpu.pipeline_mode<synchronous>, transform_indices = @transform_1, window_bounds = array<i64: 128, 128>}, {pipeline_mode = #tpu.pipeline_mode<synchronous>, transform_indices = @transform_2, window_bounds = array<i64: 1, 128>}, {pipeline_mode = #tpu.pipeline_mode<synchronous>, transform_indices = @transform_3, window_bounds = array<i64: 128, 128>}, {pipeline_mode = #tpu.pipeline_mode<synchronous>, transform_indices = @transform_4, window_bounds = array<i64: 1, 128>}, {pipeline_mode = #tpu.pipeline_mode<synchronous>, transform_indices = @transform_5, window_bounds = array<i64: 128, 24>}, {pipeline_mode = #tpu.pipeline_mode<synchronous>, transform_indices = @transform_6, window_bounds = array<i64: 1, 24>}, {transform_indices = @transform_7, window_bounds = array<i64: 8, 24>}]} {
    %c0 = arith.constant 0 : index
    %c0_0 = arith.constant 0 : index
    %0 = vector.load %arg2[%c0, %c0_0] : memref<8x128xbf16, #tpu.memory_space<vmem>>, vector<8x128xbf16>
    %c0_1 = arith.constant 0 : index
    %c0_2 = arith.constant 0 : index
    %1 = vector.load %arg3[%c0_1, %c0_2] : memref<128x128xbf16, #tpu.memory_space<vmem>>, vector<128x128xbf16>
    %cst = arith.constant dense<0.000000e+00> : vector<8x128xf32>
    %2 = tpu.matmul %0, %1, %cst {dimension_numbers = #tpu.dot_dimension_numbers<[1], [0], [0], [1], [0, 0, 1, 1], [], []>} : vector<8x128xbf16>, vector<128x128xbf16>, vector<8x128xf32> -> vector<8x128xf32>
    %c0_3 = arith.constant 0 : index
    %c0_4 = arith.constant 0 : index
    %3 = vector.load %arg4[%c0_3, %c0_4] : memref<1x128xf32, #tpu.memory_space<vmem>>, vector<1x128xf32>
    %4 = vector.broadcast %3 : vector<1x128xf32> to vector<8x128xf32>
    %5 = arith.addf %2, %4 : vector<8x128xf32>
    %cst_5 = arith.constant 0.000000e+00 : f32
    %6 = vector.broadcast %cst_5 : f32 to vector<8x128xf32>
    %7 = arith.maximumf %5, %6 : vector<8x128xf32>
    %8 = arith.truncf %7 : vector<8x128xf32> to vector<8x128xbf16>
    %c0_6 = arith.constant 0 : index
    %c0_7 = arith.constant 0 : index
    %9 = vector.load %arg5[%c0_6, %c0_7] : memref<128x128xbf16, #tpu.memory_space<vmem>>, vector<128x128xbf16>
    %cst_8 = arith.constant dense<0.000000e+00> : vector<8x128xf32>
    %10 = tpu.matmul %8, %9, %cst_8 {dimension_numbers = #tpu.dot_dimension_numbers<[1], [0], [0], [1], [0, 0, 1, 1], [], []>} : vector<8x128xbf16>, vector<128x128xbf16>, vector<8x128xf32> -> vector<8x128xf32>
    %c0_9 = arith.constant 0 : index
    %c0_10 = arith.constant 0 : index
    %11 = vector.load %arg6[%c0_9, %c0_10] : memref<1x128xf32, #tpu.memory_space<vmem>>, vector<1x128xf32>
    %12 = vector.broadcast %11 : vector<1x128xf32> to vector<8x128xf32>
    %13 = arith.addf %10, %12 : vector<8x128xf32>
    %cst_11 = arith.constant 0.000000e+00 : f32
    %14 = vector.broadcast %cst_11 : f32 to vector<8x128xf32>
    %15 = arith.maximumf %13, %14 : vector<8x128xf32>
    %16 = arith.truncf %15 : vector<8x128xf32> to vector<8x128xbf16>
    %c0_12 = arith.constant 0 : index
    %c0_13 = arith.constant 0 : index
    %17 = vector.load %arg7[%c0_12, %c0_13] : memref<128x24xbf16, #tpu.memory_space<vmem>>, vector<128x24xbf16>
    %cst_14 = arith.constant dense<0.000000e+00> : vector<8x24xf32>
    %18 = tpu.matmul %16, %17, %cst_14 {dimension_numbers = #tpu.dot_dimension_numbers<[1], [0], [0], [1], [0, 0, 1, 1], [], []>} : vector<8x128xbf16>, vector<128x24xbf16>, vector<8x24xf32> -> vector<8x24xf32>
    %c0_15 = arith.constant 0 : index
    %c0_16 = arith.constant 0 : index
    %19 = vector.load %arg8[%c0_15, %c0_16] : memref<1x24xf32, #tpu.memory_space<vmem>>, vector<1x24xf32>
    %20 = vector.broadcast %19 : vector<1x24xf32> to vector<8x24xf32>
    %21 = arith.addf %18, %20 : vector<8x24xf32>
    %c0_17 = arith.constant 0 : index
    %c0_18 = arith.constant 0 : index
    %22 = vector.load %arg9[%c0_17, %c0_18] : memref<8x24xf32, #tpu.memory_space<vmem>>, vector<8x24xf32>
    tpu.vector_store %arg9[%c0_17, %c0_18], %21 {strides = array<i32>} : memref<8x24xf32, #tpu.memory_space<vmem>>, vector<8x24xf32>,
    return
  }
  func.func @transform_0(%arg0: i32, %arg1: i32) -> (i32, i32) {
    %c0_i32 = arith.constant 0 : i32
    %c0_i32_0 = arith.constant 0 : i32
    return %arg0, %c0_i32 : i32, i32
  }
  func.func @transform_1(%arg0: i32, %arg1: i32) -> (i32, i32) {
    %c0_i32 = arith.constant 0 : i32
    %c0_i32_0 = arith.constant 0 : i32
    %c0_i32_1 = arith.constant 0 : i32
    return %c0_i32, %c0_i32_0 : i32, i32
  }
  func.func @transform_2(%arg0: i32, %arg1: i32) -> (i32, i32) {
    %c0_i32 = arith.constant 0 : i32
    %c0_i32_0 = arith.constant 0 : i32
    %c0_i32_1 = arith.constant 0 : i32
    return %c0_i32, %c0_i32_0 : i32, i32
  }
  func.func @transform_3(%arg0: i32, %arg1: i32) -> (i32, i32) {
    %c0_i32 = arith.constant 0 : i32
    %c0_i32_0 = arith.constant 0 : i32
    %c0_i32_1 = arith.constant 0 : i32
    return %c0_i32, %c0_i32_0 : i32, i32
  }
  func.func @transform_4(%arg0: i32, %arg1: i32) -> (i32, i32) {
    %c0_i32 = arith.constant 0 : i32
    %c0_i32_0 = arith.constant 0 : i32
    %c0_i32_1 = arith.constant 0 : i32
    return %c0_i32, %c0_i32_0 : i32, i32
  }
  func.func @transform_5(%arg0: i32, %arg1: i32) -> (i32, i32) {
    %c0_i32 = arith.constant 0 : i32
    %c0_i32_0 = arith.constant 0 : i32
    return %c0_i32, %arg1 : i32, i32
  }
  func.func @transform_6(%arg0: i32, %arg1: i32) -> (i32, i32) {
    %c0_i32 = arith.constant 0 : i32
    %c0_i32_0 = arith.constant 0 : i32
    return %c0_i32, %arg1 : i32, i32
  }
  func.func @transform_7(%arg0: i32, %arg1: i32) -> (i32, i32) {
    %c0_i32 = arith.constant 0 : i32
    return %arg0, %arg1 : i32, i32
  }
}

module attributes {stable_mosaic.version = 11 : i64} {
  func.func @_decoder_kernel(%arg0: i32, %arg1: i32, %arg2: memref<8x128xbf16, #tpu.memory_space<vmem>>, %arg3: memref<128x128xbf16, #tpu.memory_space<vmem>>, %arg4: memref<1x128xf32, #tpu.memory_space<vmem>>, %arg5: memref<128x128xbf16, #tpu.memory_space<vmem>>, %arg6: memref<1x128xf32, #tpu.memory_space<vmem>>, %arg7: memref<128x24xbf16, #tpu.memory_space<vmem>>, %arg8: memref<1x24xf32, #tpu.memory_space<vmem>>, %arg9: memref<8x24xf32, #tpu.memory_space<vmem>>) attributes {dimension_semantics = [#tpu.dimension_semantics<parallel>, #tpu.dimension_semantics<parallel>], iteration_bounds = array<i64: 1, 1>, scalar_prefetch = 0 : i64, scratch_operands = 0 : i64, tpu.core_type = #tpu.core_type<tc>, window_params = [{transform_indices = @transform_0, window_bounds = array<i64: 8, 128>}, {pipeline_mode = #tpu.pipeline_mode<synchronous>, transform_indices = @transform_1, window_bounds = array<i64: 128, 128>}, {pipeline_mode = #tpu.pipeline_mode<synchronous>, transform_indices = @transform_2, window_bounds = array<i64: 1, 128>}, {pipeline_mode = #tpu.pipeline_mode<synchronous>, transform_indices = @transform_3, window_bounds = array<i64: 128, 128>}, {pipeline_mode = #tpu.pipeline_mode<synchronous>, transform_indices = @transform_4, window_bounds = array<i64: 1, 128>}, {transform_indices = @transform_5, window_bounds = array<i64: 128, 24>}, {transform_indices = @transform_6, window_bounds = array<i64: 1, 24>}, {transform_indices = @transform_7, window_bounds = array<i64: 8, 24>}]} {
    %c0 = arith.constant 0 : index
    %c0_0 = arith.constant 0 : index
    %0 = vector.load %arg2[%c0, %c0_0] : memref<8x128xbf16, #tpu.memory_space<vmem>>, vector<8x128xbf16>
    %c0_1 = arith.constant 0 : index
    %c0_2 = arith.constant 0 : index
    %1 = vector.load %arg3[%c0_1, %c0_2] : memref<128x128xbf16, #tpu.memory_space<vmem>>, vector<128x128xbf16>
    %cst = arith.constant dense<0.000000e+00> : vector<8x128xf32>
    %2 = tpu.matmul %0, %1, %cst {dimension_numbers = #tpu.dot_dimension_numbers<[1], [0], [0], [1], [0, 0, 1, 1], [], []>} : vector<8x128xbf16>, vector<128x128xbf16>, vector<8x128xf32> -> vector<8x128xf32>
    %c0_3 = arith.constant 0 : index
    %c0_4 = arith.constant 0 : index
    %3 = vector.load %arg4[%c0_3, %c0_4] : memref<1x128xf32, #tpu.memory_space<vmem>>, vector<1x128xf32>
    %4 = vector.broadcast %3 : vector<1x128xf32> to vector<8x128xf32>
    %5 = arith.addf %2, %4 : vector<8x128xf32>
    %cst_5 = arith.constant 0.000000e+00 : f32
    %6 = vector.broadcast %cst_5 : f32 to vector<8x128xf32>
    %7 = arith.maximumf %5, %6 : vector<8x128xf32>
    %8 = arith.truncf %7 : vector<8x128xf32> to vector<8x128xbf16>
    %c0_6 = arith.constant 0 : index
    %c0_7 = arith.constant 0 : index
    %9 = vector.load %arg5[%c0_6, %c0_7] : memref<128x128xbf16, #tpu.memory_space<vmem>>, vector<128x128xbf16>
    %cst_8 = arith.constant dense<0.000000e+00> : vector<8x128xf32>
    %10 = tpu.matmul %8, %9, %cst_8 {dimension_numbers = #tpu.dot_dimension_numbers<[1], [0], [0], [1], [0, 0, 1, 1], [], []>} : vector<8x128xbf16>, vector<128x128xbf16>, vector<8x128xf32> -> vector<8x128xf32>
    %c0_9 = arith.constant 0 : index
    %c0_10 = arith.constant 0 : index
    %11 = vector.load %arg6[%c0_9, %c0_10] : memref<1x128xf32, #tpu.memory_space<vmem>>, vector<1x128xf32>
    %12 = vector.broadcast %11 : vector<1x128xf32> to vector<8x128xf32>
    %13 = arith.addf %10, %12 : vector<8x128xf32>
    %cst_11 = arith.constant 0.000000e+00 : f32
    %14 = vector.broadcast %cst_11 : f32 to vector<8x128xf32>
    %15 = arith.maximumf %13, %14 : vector<8x128xf32>
    %16 = arith.truncf %15 : vector<8x128xf32> to vector<8x128xbf16>
    %c0_12 = arith.constant 0 : index
    %c0_13 = arith.constant 0 : index
    %17 = vector.load %arg7[%c0_12, %c0_13] : memref<128x24xbf16, #tpu.memory_space<vmem>>, vector<128x24xbf16>
    %cst_14 = arith.constant dense<0.000000e+00> : vector<8x24xf32>
    %18 = tpu.matmul %16, %17, %cst_14 {dimension_numbers = #tpu.dot_dimension_numbers<[1], [0], [0], [1], [0, 0, 1, 1], [], []>} : vector<8x128xbf16>, vector<128x24xbf16>, vector<8x24xf32> -> vector<8x24xf32>
    %c0_15 = arith.constant 0 : index
    %c0_16 = arith.constant 0 : index
    %19 = vector.load %arg8[%c0_15, %c0_16] : memref<1x24xf32, #tpu.memory_space<vmem>>, vector<1x24xf32>
    %20 = vector.broadcast %19 : vector<1x24xf32> to vector<8x24xf32>
    %21 = arith.addf %18, %20 : vector<8x24xf32>
    %c0_17 = arith.constant 0 : index
    %c0_18 = arith.constant 0 : index
    %22 = vector.load %arg9[%c0_17, %c0_18] : memref<8x24xf32, #tpu.memory_space<vmem>>, vector<8x24xf32>
    tpu.vector_store %arg9[%c0_17, %c0_18], %21 {strides = array<i32>} : memref<8x24xf32, #tpu.memory_space<vmem>>, vector<8x24xf32>,
    return
  }
  func.func @transform_0(%arg0: i32, %arg1: i32) -> (i32, i32) {
    %c0_i32 = arith.constant 0 : i32
    %c0_i32_0 = arith.constant 0 : i32
    return %arg0, %c0_i32 : i32, i32
  }
  func.func @transform_1(%arg0: i32, %arg1: i32) -> (i32, i32) {
    %c0_i32 = arith.constant 0 : i32
    %c0_i32_0 = arith.constant 0 : i32
    %c0_i32_1 = arith.constant 0 : i32
    return %c0_i32, %c0_i32_0 : i32, i32
  }
  func.func @transform_2(%arg0: i32, %arg1: i32) -> (i32, i32) {
    %c0_i32 = arith.constant 0 : i32
    %c0_i32_0 = arith.constant 0 : i32
    %c0_i32_1 = arith.constant 0 : i32
    return %c0_i32, %c0_i32_0 : i32, i32
  }
  func.func @transform_3(%arg0: i32, %arg1: i32) -> (i32, i32) {
    %c0_i32 = arith.constant 0 : i32
    %c0_i32_0 = arith.constant 0 : i32
    %c0_i32_1 = arith.constant 0 : i32
    return %c0_i32, %c0_i32_0 : i32, i32
  }
  func.func @transform_4(%arg0: i32, %arg1: i32) -> (i32, i32) {
    %c0_i32 = arith.constant 0 : i32
    %c0_i32_0 = arith.constant 0 : i32
    %c0_i32_1 = arith.constant 0 : i32
    return %c0_i32, %c0_i32_0 : i32, i32
  }
  func.func @transform_5(%arg0: i32, %arg1: i32) -> (i32, i32) {
    %c0_i32 = arith.constant 0 : i32
    %c0_i32_0 = arith.constant 0 : i32
    return %c0_i32, %arg1 : i32, i32
  }
  func.func @transform_6(%arg0: i32, %arg1: i32) -> (i32, i32) {
    %c0_i32 = arith.constant 0 : i32
    %c0_i32_0 = arith.constant 0 : i32
    return %c0_i32, %arg1 : i32, i32
  }
  func.func @transform_7(%arg0: i32, %arg1: i32) -> (i32, i32) {
    %c0_i32 = arith.constant 0 : i32
    return %arg0, %arg1 : i32, i32
  }
}

</mosaic_0001>

<llo_original>
// kernel: tpu_custom_call.1
$region0: #{tpu_custom_call.1}
  #allocation0 [shape = 'u32[]', space=smem, size = 0x4, offset = 0x4, fixed_abs, tag = 'smem constant byte address 0x4 - core index']
  #allocation1 [shape = 'u32[144,128]{1,0:T(1,128)}', space=vmem, size = 0x12000, scoped, tag = 'internal scratch']
  %s0 = inlined_call_operand.vmem [shape: bf16[8,128], index: 0, kind: input, shape index: {}]
  %s1 = inlined_call_operand.vmem [shape: bf16[128,128], index: 1, kind: input, shape index: {}]
  %s2 = inlined_call_operand.vmem [shape: f32[1,128], index: 2, kind: input, shape index: {}]
  %s3 = inlined_call_operand.hbm [shape: bf16[128,128], index: 3, kind: input, shape index: {}]
  %s4 = inlined_call_operand.vmem [shape: f32[1,128], index: 4, kind: input, shape index: {}]
  %s5 = inlined_call_operand.vmem [shape: bf16[128,24], index: 5, kind: input, shape index: {}]
  %s6 = inlined_call_operand.vmem [shape: f32[1,24], index: 6, kind: input, shape index: {}]
  %s7 = inlined_call_operand.hbm [shape: f32[8,24], index: 7, kind: output, shape index: {}]
  %s8 = sld [smem:[#allocation0]]
  $region42: #{tpu_custom_call.1} parent=0
    _
  %s10 = ssub.s32 1, %s8
  %s11 = scalar_select 0, %s10, %s8
  $region1: #{tpu_custom_call.1} parent=0
    #allocation2 [shape = 'u8[32768]{0}', space=vmem, size = 0x8000, scoped, tag = 'input window, operand 3, single buffered']
    #allocation3 [shape = 's32[1]{0}', space=sflag, size = 0x4, scoped, tag = 'scoped memory for tpu_custom_call.1']
    #allocation4 [shape = 's32[1]{0}', space=sflag, size = 0x4, scoped, tag = 'scoped memory for tpu_custom_call.1']
    #allocation5 [shape = 'u8[4096]{0}', space=vmem, size = 0x1000, scoped, tag = 'output window, operand 0, single buffered']
    %12 = vsyncpa [#allocation3], 0
    %13 = vsyncpa [#allocation4], 0
    // Predicated region
    $region2: #{tpu_custom_call.1} parent=1 // pred_check
      _
    $region3: #{tpu_custom_call.1} parent=1 // pred_check_branch
      %15 = sbr.rel (0) target = $region5
    $region4: #{tpu_custom_call.1} parent=1 // pred_region
      _
    $region5: #{tpu_custom_call.1} parent=1 // pred_fallthru
      _
    // Predicated region
    $region6: #{tpu_custom_call.1} parent=1 // pred_check
      _
    $region7: #{tpu_custom_call.1} parent=1 // pred_check_branch
      %17 = sbr.rel (0) target = $region9
    $region8: #{tpu_custom_call.1} parent=1 // pred_region
      _
    $region9: #{tpu_custom_call.1} parent=1 // pred_fallthru
      _
    // Predicated region
    $region10: #{tpu_custom_call.1} parent=1 // pred_check
      _
    $region11: #{tpu_custom_call.1} parent=1 // pred_check_branch
      %19 = sbr.rel (0) target = $region13
    $region12: #{tpu_custom_call.1} parent=1 // pred_region
      _
    $region13: #{tpu_custom_call.1} parent=1 // pred_fallthru
      _
    // Predicated region
    $region14: #{tpu_custom_call.1} parent=1 // pred_check
      _
    $region15: #{tpu_custom_call.1} parent=1 // pred_check_branch
      %21 = sbr.rel (0) target = $region17
    $region16: #{tpu_custom_call.1} parent=1 // pred_region
      %s23 = ssub.s32 1024, 1024
      %24 = vsyncadd [#allocation3], %s23
      %s25 = sshll.u32 [#allocation2], 4
      %s26 = int_to_ptr.vmem [resolvable:$true] %s25
      %31 = dma.hbm_to_vmem [thread:$0]  %s3, 1024, %s26, [#allocation3], 64, 64, 4
    $region17: #{tpu_custom_call.1} parent=1 // pred_fallthru
      _
    // Predicated region
    $region18: #{tpu_custom_call.1} parent=1 // pred_check
      _
    $region19: #{tpu_custom_call.1} parent=1 // pred_check_branch
      %33 = sbr.rel (0) target = $region21
    $region20: #{tpu_custom_call.1} parent=1 // pred_region
      _
    $region21: #{tpu_custom_call.1} parent=1 // pred_fallthru
      _
    // Predicated region
    $region22: #{tpu_custom_call.1} parent=1 // pred_check
      _
    $region23: #{tpu_custom_call.1} parent=1 // pred_check_branch
      %35 = sbr.rel (0) target = $region25
    $region24: #{tpu_custom_call.1} parent=1 // pred_region
      _
    $region25: #{tpu_custom_call.1} parent=1 // pred_fallthru
      _
    // Predicated region
    $region26: #{tpu_custom_call.1} parent=1 // pred_check
      _
    $region27: #{tpu_custom_call.1} parent=1 // pred_check_branch
      %37 = sbr.rel (0) target = $region29
    $region28: #{tpu_custom_call.1} parent=1 // pred_region
      _
    $region29: #{tpu_custom_call.1} parent=1 // pred_fallthru
      _
    // Predicated region
    $region30: #{tpu_custom_call.1} parent=1 // pred_check
      _
    $region31: #{tpu_custom_call.1} parent=1 // pred_check_branch
      %39 = sbr.rel (0) target = $region33
    $region32: #{tpu_custom_call.1} parent=1 // pred_region
      %40 = dma.done [#allocation3], 1024
    $region33: #{tpu_custom_call.1} parent=1 // pred_fallthru
      _
    %v42 = vld [vmem:[%s0] sm:$0xf]
    %v43 = vld [vmem:[%s1] sm:$0xf]
    %v44 = vld [vmem:[%s1 + $0x4] sm:$0xf]
    %v45 = vld [vmem:[%s1 + $0x8] sm:$0xf]
    %v46 = vld [vmem:[%s1 + $0xc] sm:$0xf]
    %v47 = vld [vmem:[%s1 + $0x10] sm:$0xf]
    %v48 = vld [vmem:[%s1 + $0x14] sm:$0xf]
    %v49 = vld [vmem:[%s1 + $0x18] sm:$0xf]
    %v50 = vld [vmem:[%s1 + $0x1c] sm:$0xf]
    %v51 = vld [vmem:[%s1 + $0x20] sm:$0xf]
    %v52 = vld [vmem:[%s1 + $0x24] sm:$0xf]
    %v53 = vld [vmem:[%s1 + $0x28] sm:$0xf]
    %v54 = vld [vmem:[%s1 + $0x2c] sm:$0xf]
    %v55 = vld [vmem:[%s1 + $0x30] sm:$0xf]
    %v56 = vld [vmem:[%s1 + $0x34] sm:$0xf]
    %v57 = vld [vmem:[%s1 + $0x38] sm:$0xf]
    %v58 = vld [vmem:[%s1 + $0x3c] sm:$0xf]
    %v59 = vld [vmem:[%s2] sm:$0x1]
    %v61 = vlaneseq
    %v62 = vshrl.u32 %v61, 7
    %v63 = vsub.s32 0, %v62
    %v64 = vrot.slane %v59, %v63
    %v82 = vunpack.c.l.b16 %v43
    %v83 = vunpack.c.l.b16 %v44
    %v84 = vunpack.c.l.b16 %v45
    %v85 = vunpack.c.l.b16 %v46
    %v86 = vunpack.c.l.b16 %v47
    %v87 = vunpack.c.l.b16 %v48
    %v88 = vunpack.c.l.b16 %v49
    %v89 = vunpack.c.l.b16 %v50
    %v90 = vunpack.c.l.b16 %v51
    %v91 = vunpack.c.l.b16 %v52
    %v92 = vunpack.c.l.b16 %v53
    %v93 = vunpack.c.l.b16 %v54
    %v94 = vunpack.c.l.b16 %v55
    %v95 = vunpack.c.l.b16 %v56
    %v96 = vunpack.c.l.b16 %v57
    %v97 = vunpack.c.l.b16 %v58
    %v98 = vpack.c.b16 %v83, %v82
    %v99 = vpack.c.b16 %v85, %v84
    %v100 = vpack.c.b16 %v87, %v86
    %v101 = vpack.c.b16 %v89, %v88
    %v102 = vpack.c.b16 %v91, %v90
    %v103 = vpack.c.b16 %v93, %v92
    %v104 = vpack.c.b16 %v95, %v94
    %v105 = vpack.c.b16 %v97, %v96
    %114 = vmatprep.subr.bf16.mxu0 0
    %115 = vmatpush1.bf16.msra.mxu0 %v98
    %116 = vmatprep.subr.bf16.mxu0 0
    %117 = vmatpush1.bf16.msra.mxu0 %v99
    %118 = vmatprep.subr.bf16.mxu0 0
    %119 = vmatpush1.bf16.msra.mxu0 %v100
    %120 = vmatprep.subr.bf16.mxu0 0
    %121 = vmatpush1.bf16.msra.mxu0 %v101
    %122 = vmatprep.subr.bf16.mxu0 0
    %123 = vmatpush1.bf16.msra.mxu0 %v102
    %124 = vmatprep.subr.bf16.mxu0 0
    %125 = vmatpush1.bf16.msra.mxu0 %v103
    %126 = vmatprep.subr.bf16.mxu0 0
    %127 = vmatpush1.bf16.msra.mxu0 %v104
    %128 = vmatprep.subr.bf16.mxu0 0
    %129 = vmatpush1.bf16.msra.mxu0 %v105
    %130 = vmatprep.subr.bf16.mxu0 0
    %131 = vmatpush1.bf16.msra.mxu0 0
    %132 = vmatprep.subr.bf16.mxu0 0
    %133 = vmatpush1.bf16.msra.mxu0 0
    %134 = vmatprep.subr.bf16.mxu0 0
    %135 = vmatpush1.bf16.msra.mxu0 0
    %136 = vmatprep.subr.bf16.mxu0 0
    %137 = vmatpush1.bf16.msra.mxu0 0
    %138 = vmatprep.subr.bf16.mxu0 0
    %139 = vmatpush1.bf16.msra.mxu0 0
    %140 = vmatprep.subr.bf16.mxu0 0
    %141 = vmatpush1.bf16.msra.mxu0 0
    %142 = vmatprep.subr.bf16.mxu0 0
    %143 = vmatpush1.bf16.msra.mxu0 0
    %144 = vmatprep.subr.bf16.mxu0 0
    %145 = vmatpush1.bf16.msra.mxu0 0
    %146 = vmatprep.mubr.bf16.mxu0 0
    %147 = vmatmul.mubr.bf16.gmra.mrb[0].mxu0 %v42
    %v148 = vpop.f32.mrb[0].mxu0
    %v149 = vadd.f32 %v64, %v148
    %v150 = vpop.f32.mrb[0].mxu0
    %v151 = vpop.f32.mrb[0].mxu0
    %v152 = vpop.f32.mrb[0].mxu0
    %153 = vdwg.mxu0
    %v154 = vmax.f32 %v149, 0.0
    %v155 = vpack.c.bf16 %v154, %v154
    %v156 = vld [vmem:[#allocation2] sm:$0xf]
    %v157 = vld [vmem:[#allocation2 + $0x4] sm:$0xf]
    %v158 = vld [vmem:[#allocation2 + $0x8] sm:$0xf]
    %v159 = vld [vmem:[#allocation2 + $0xc] sm:$0xf]
    %v160 = vld [vmem:[#allocation2 + $0x10] sm:$0xf]
    %v161 = vld [vmem:[#allocation2 + $0x14] sm:$0xf]
    %v162 = vld [vmem:[#allocation2 + $0x18] sm:$0xf]
    %v163 = vld [vmem:[#allocation2 + $0x1c] sm:$0xf]
    %v164 = vld [vmem:[#allocation2 + $0x20] sm:$0xf]
    %v165 = vld [vmem:[#allocation2 + $0x24] sm:$0xf]
    %v166 = vld [vmem:[#allocation2 + $0x28] sm:$0xf]
    %v167 = vld [vmem:[#allocation2 + $0x2c] sm:$0xf]
    %v168 = vld [vmem:[#allocation2 + $0x30] sm:$0xf]
    %v169 = vld [vmem:[#allocation2 + $0x34] sm:$0xf]
    %v170 = vld [vmem:[#allocation2 + $0x38] sm:$0xf]
    %v171 = vld [vmem:[#allocation2 + $0x3c] sm:$0xf]
    %v172 = vld [vmem:[%s4] sm:$0x1]
    %v174 = vlaneseq
    %v175 = vshrl.u32 %v174, 7
    %v176 = vsub.s32 0, %v175
    %v177 = vrot.slane %v172, %v176
    %v195 = vunpack.c.l.b16 %v156
    %v196 = vunpack.c.l.b16 %v157
    %v197 = vunpack.c.l.b16 %v158
    %v198 = vunpack.c.l.b16 %v159
    %v199 = vunpack.c.l.b16 %v160
    %v200 = vunpack.c.l.b16 %v161
    %v201 = vunpack.c.l.b16 %v162
    %v202 = vunpack.c.l.b16 %v163
    %v203 = vunpack.c.l.b16 %v164
    %v204 = vunpack.c.l.b16 %v165
    %v205 = vunpack.c.l.b16 %v166
    %v206 = vunpack.c.l.b16 %v167
    %v207 = vunpack.c.l.b16 %v168
    %v208 = vunpack.c.l.b16 %v169
    %v209 = vunpack.c.l.b16 %v170
    %v210 = vunpack.c.l.b16 %v171
    %v211 = vpack.c.b16 %v196, %v195
    %v212 = vpack.c.b16 %v198, %v197
    %v213 = vpack.c.b16 %v200, %v199
    %v214 = vpack.c.b16 %v202, %v201
    %v215 = vpack.c.b16 %v204, %v203
    %v216 = vpack.c.b16 %v206, %v205
    %v217 = vpack.c.b16 %v208, %v207
    %v218 = vpack.c.b16 %v210, %v209
    %227 = vmatprep.subr.bf16.mxu0 0
    %228 = vmatpush1.bf16.msra.mxu0 %v211
    %229 = vmatprep.subr.bf16.mxu0 0
    %230 = vmatpush1.bf16.msra.mxu0 %v212
    %231 = vmatprep.subr.bf16.mxu0 0
    %232 = vmatpush1.bf16.msra.mxu0 %v213
    %233 = vmatprep.subr.bf16.mxu0 0
    %234 = vmatpush1.bf16.msra.mxu0 %v214
    %235 = vmatprep.subr.bf16.mxu0 0
    %236 = vmatpush1.bf16.msra.mxu0 %v215
    %237 = vmatprep.subr.bf16.mxu0 0
    %238 = vmatpush1.bf16.msra.mxu0 %v216
    %239 = vmatprep.subr.bf16.mxu0 0
    %240 = vmatpush1.bf16.msra.mxu0 %v217
    %241 = vmatprep.subr.bf16.mxu0 0
    %242 = vmatpush1.bf16.msra.mxu0 %v218
    %243 = vmatprep.subr.bf16.mxu0 0
    %244 = vmatpush1.bf16.msra.mxu0 0
    %245 = vmatprep.subr.bf16.mxu0 0
    %246 = vmatpush1.bf16.msra.mxu0 0
    %247 = vmatprep.subr.bf16.mxu0 0
    %248 = vmatpush1.bf16.msra.mxu0 0
    %249 = vmatprep.subr.bf16.mxu0 0
    %250 = vmatpush1.bf16.msra.mxu0 0
    %251 = vmatprep.subr.bf16.mxu0 0
    %252 = vmatpush1.bf16.msra.mxu0 0
    %253 = vmatprep.subr.bf16.mxu0 0
    %254 = vmatpush1.bf16.msra.mxu0 0
    %255 = vmatprep.subr.bf16.mxu0 0
    %256 = vmatpush1.bf16.msra.mxu0 0
    %257 = vmatprep.subr.bf16.mxu0 0
    %258 = vmatpush1.bf16.msra.mxu0 0
    %259 = vmatprep.mubr.bf16.mxu0 0
    %260 = vmatmul.mubr.bf16.gmra.mrb[0].mxu0 %v155
    %v261 = vpop.f32.mrb[0].mxu0
    %v262 = vadd.f32 %v177, %v261
    %v263 = vpop.f32.mrb[0].mxu0
    %v264 = vpop.f32.mrb[0].mxu0
    %v265 = vpop.f32.mrb[0].mxu0
    %266 = vdwg.mxu0
    %v267 = vmax.f32 %v262, 0.0
    %v268 = vpack.c.bf16 %v267, %v267
    %v269 = vld [vmem:[%s5] sm:$0xf]
    %v270 = vld [vmem:[%s5 + $0x4] sm:$0xf]
    %v271 = vld [vmem:[%s5 + $0x8] sm:$0xf]
    %v272 = vld [vmem:[%s5 + $0xc] sm:$0xf]
    %v273 = vld [vmem:[%s5 + $0x10] sm:$0xf]
    %v274 = vld [vmem:[%s5 + $0x14] sm:$0xf]
    %v275 = vld [vmem:[%s5 + $0x18] sm:$0xf]
    %v276 = vld [vmem:[%s5 + $0x1c] sm:$0xf]
    %v277 = vld [vmem:[%s5 + $0x20] sm:$0xf]
    %v278 = vld [vmem:[%s5 + $0x24] sm:$0xf]
    %v279 = vld [vmem:[%s5 + $0x28] sm:$0xf]
    %v280 = vld [vmem:[%s5 + $0x2c] sm:$0xf]
    %v281 = vld [vmem:[%s5 + $0x30] sm:$0xf]
    %v282 = vld [vmem:[%s5 + $0x34] sm:$0xf]
    %v283 = vld [vmem:[%s5 + $0x38] sm:$0xf]
    %v284 = vld [vmem:[%s5 + $0x3c] sm:$0xf]
    %v285 = vld [vmem:[%s6] sm:$0x1]
    %v287 = vlaneseq
    %v288 = vshrl.u32 %v287, 7
    %v289 = vsub.s32 0, %v288
    %v290 = vrot.slane %v285, %v289
    %v308 = vunpack.c.l.b16 %v269
    %v309 = vunpack.c.l.b16 %v270
    %v310 = vunpack.c.l.b16 %v271
    %v311 = vunpack.c.l.b16 %v272
    %v312 = vunpack.c.l.b16 %v273
    %v313 = vunpack.c.l.b16 %v274
    %v314 = vunpack.c.l.b16 %v275
    %v315 = vunpack.c.l.b16 %v276
    %v316 = vunpack.c.l.b16 %v277
    %v317 = vunpack.c.l.b16 %v278
    %v318 = vunpack.c.l.b16 %v279
    %v319 = vunpack.c.l.b16 %v280
    %v320 = vunpack.c.l.b16 %v281
    %v321 = vunpack.c.l.b16 %v282
    %v322 = vunpack.c.l.b16 %v283
    %v323 = vunpack.c.l.b16 %v284
    %v324 = vpack.c.b16 %v309, %v308
    %v325 = vpack.c.b16 %v311, %v310
    %v326 = vpack.c.b16 %v313, %v312
    %v327 = vpack.c.b16 %v315, %v314
    %v328 = vpack.c.b16 %v317, %v316
    %v329 = vpack.c.b16 %v319, %v318
    %v330 = vpack.c.b16 %v321, %v320
    %v331 = vpack.c.b16 %v323, %v322
    %340 = vmatprep.subr.bf16.mxu0 0
    %341 = vmatpush1.bf16.msra.mxu0 %v324
    %342 = vmatprep.subr.bf16.mxu0 0
    %343 = vmatpush1.bf16.msra.mxu0 %v325
    %344 = vmatprep.subr.bf16.mxu0 0
    %345 = vmatpush1.bf16.msra.mxu0 %v326
    %346 = vmatprep.subr.bf16.mxu0 0
    %347 = vmatpush1.bf16.msra.mxu0 %v327
    %348 = vmatprep.subr.bf16.mxu0 0
    %349 = vmatpush1.bf16.msra.mxu0 %v328
    %350 = vmatprep.subr.bf16.mxu0 0
    %351 = vmatpush1.bf16.msra.mxu0 %v329
    %352 = vmatprep.subr.bf16.mxu0 0
    %353 = vmatpush1.bf16.msra.mxu0 %v330
    %354 = vmatprep.subr.bf16.mxu0 0
    %355 = vmatpush1.bf16.msra.mxu0 %v331
    %356 = vmatprep.subr.bf16.mxu0 0
    %357 = vmatpush1.bf16.msra.mxu0 0
    %358 = vmatprep.subr.bf16.mxu0 0
    %359 = vmatpush1.bf16.msra.mxu0 0
    %360 = vmatprep.subr.bf16.mxu0 0
    %361 = vmatpush1.bf16.msra.mxu0 0
    %362 = vmatprep.subr.bf16.mxu0 0
    %363 = vmatpush1.bf16.msra.mxu0 0
    %364 = vmatprep.subr.bf16.mxu0 0
    %365 = vmatpush1.bf16.msra.mxu0 0
    %366 = vmatprep.subr.bf16.mxu0 0
    %367 = vmatpush1.bf16.msra.mxu0 0
    %368 = vmatprep.subr.bf16.mxu0 0
    %369 = vmatpush1.bf16.msra.mxu0 0
    %370 = vmatprep.subr.bf16.mxu0 0
    %371 = vmatpush1.bf16.msra.mxu0 0
    %372 = vmatprep.mubr.bf16.mxu0 0
    %373 = vmatmul.mubr.bf16.gmra.mrb[0].mxu0 %v268
    %v374 = vpop.f32.mrb[0].mxu0
    %v375 = vadd.f32 %v290, %v374
    %v376 = vpop.f32.mrb[0].mxu0
    %v377 = vpop.f32.mrb[0].mxu0
    %v378 = vpop.f32.mrb[0].mxu0
    %379 = vdwg.mxu0
    %vm380 = vcmask 195584
    %381 = vst.msk [vmem:[#allocation5] sm:$0xff] %vm380, %v375
    // Predicated region
    $region34: #{tpu_custom_call.1} parent=1 // pred_check
      _
    $region35: #{tpu_custom_call.1} parent=1 // pred_check_branch
      %383 = sbr.rel (0) target = $region37
    $region36: #{tpu_custom_call.1} parent=1 // pred_region
      %s385 = ssub.s32 128, 128
      %386 = vsyncadd [#allocation4], %s385
      %s388 = sshll.u32 [#allocation5], 4
      %s389 = int_to_ptr.vmem [resolvable:$true] %s388
      %391 = dma.vmem_to_hbm [thread:$0]  %s389, 128, %s7, [#allocation4]
    $region37: #{tpu_custom_call.1} parent=1 // pred_fallthru
      _
    // Predicated region
    $region38: #{tpu_custom_call.1} parent=1 // pred_check
      _
    $region39: #{tpu_custom_call.1} parent=1 // pred_check_branch
      %393 = sbr.rel (0) target = $region41
    $region40: #{tpu_custom_call.1} parent=1 // pred_region
      %394 = dma.done [#allocation4], 128
    $region41: #{tpu_custom_call.1} parent=1 // pred_fallthru
      _
    %395 = vsyncpa [#allocation3], 1
    %396 = vsyncpa [#allocation4], 1

// kernel: tpu_custom_call.1
$region0: #{tpu_custom_call.1}
  #allocation0 [shape = 'u32[]', space=smem, size = 0x4, offset = 0x4, fixed_abs, tag = 'smem constant byte address 0x4 - core index']
  #allocation1 [shape = 'u32[144,128]{1,0:T(1,128)}', space=vmem, size = 0x12000, scoped, tag = 'internal scratch']
  %s0 = inlined_call_operand.vmem [shape: bf16[8,128], index: 0, kind: input, shape index: {}]
  %s1 = inlined_call_operand.vmem [shape: bf16[128,128], index: 1, kind: input, shape index: {}]
  %s2 = inlined_call_operand.vmem [shape: f32[1,128], index: 2, kind: input, shape index: {}]
  %s3 = inlined_call_operand.hbm [shape: bf16[128,128], index: 3, kind: input, shape index: {}]
  %s4 = inlined_call_operand.vmem [shape: f32[1,128], index: 4, kind: input, shape index: {}]
  %s5 = inlined_call_operand.vmem [shape: bf16[128,24], index: 5, kind: input, shape index: {}]
  %s6 = inlined_call_operand.vmem [shape: f32[1,24], index: 6, kind: input, shape index: {}]
  %s7 = inlined_call_operand.hbm [shape: f32[8,24], index: 7, kind: output, shape index: {}]
  %s8 = sld [smem:[#allocation0]]
  $region42: #{tpu_custom_call.1} parent=0
    _
  %s10 = ssub.s32 1, %s8
  %s11 = scalar_select 0, %s10, %s8
  $region1: #{tpu_custom_call.1} parent=0
    #allocation2 [shape = 'u8[32768]{0}', space=vmem, size = 0x8000, scoped, tag = 'input window, operand 3, single buffered']
    #allocation3 [shape = 's32[1]{0}', space=sflag, size = 0x4, scoped, tag = 'scoped memory for tpu_custom_call.1']
    #allocation4 [shape = 's32[1]{0}', space=sflag, size = 0x4, scoped, tag = 'scoped memory for tpu_custom_call.1']
    #allocation5 [shape = 'u8[4096]{0}', space=vmem, size = 0x1000, scoped, tag = 'output window, operand 0, single buffered']
    %12 = vsyncpa [#allocation3], 0
    %13 = vsyncpa [#allocation4], 0
    // Predicated region
    $region2: #{tpu_custom_call.1} parent=1 // pred_check
      _
    $region3: #{tpu_custom_call.1} parent=1 // pred_check_branch
      %15 = sbr.rel (0) target = $region5
    $region4: #{tpu_custom_call.1} parent=1 // pred_region
      _
    $region5: #{tpu_custom_call.1} parent=1 // pred_fallthru
      _
    // Predicated region
    $region6: #{tpu_custom_call.1} parent=1 // pred_check
      _
    $region7: #{tpu_custom_call.1} parent=1 // pred_check_branch
      %17 = sbr.rel (0) target = $region9
    $region8: #{tpu_custom_call.1} parent=1 // pred_region
      _
    $region9: #{tpu_custom_call.1} parent=1 // pred_fallthru
      _
    // Predicated region
    $region10: #{tpu_custom_call.1} parent=1 // pred_check
      _
    $region11: #{tpu_custom_call.1} parent=1 // pred_check_branch
      %19 = sbr.rel (0) target = $region13
    $region12: #{tpu_custom_call.1} parent=1 // pred_region
      _
    $region13: #{tpu_custom_call.1} parent=1 // pred_fallthru
      _
    // Predicated region
    $region14: #{tpu_custom_call.1} parent=1 // pred_check
      _
    $region15: #{tpu_custom_call.1} parent=1 // pred_check_branch
      %21 = sbr.rel (0) target = $region17
    $region16: #{tpu_custom_call.1} parent=1 // pred_region
      %s23 = ssub.s32 1024, 1024
      %24 = vsyncadd [#allocation3], %s23
      %s25 = sshll.u32 [#allocation2], 4
      %s26 = int_to_ptr.vmem [resolvable:$true] %s25
      %31 = dma.hbm_to_vmem [thread:$0]  %s3, 1024, %s26, [#allocation3], 64, 64, 4
    $region17: #{tpu_custom_call.1} parent=1 // pred_fallthru
      _
    // Predicated region
    $region18: #{tpu_custom_call.1} parent=1 // pred_check
      _
    $region19: #{tpu_custom_call.1} parent=1 // pred_check_branch
      %33 = sbr.rel (0) target = $region21
    $region20: #{tpu_custom_call.1} parent=1 // pred_region
      _
    $region21: #{tpu_custom_call.1} parent=1 // pred_fallthru
      _
    // Predicated region
    $region22: #{tpu_custom_call.1} parent=1 // pred_check
      _
    $region23: #{tpu_custom_call.1} parent=1 // pred_check_branch
      %35 = sbr.rel (0) target = $region25
    $region24: #{tpu_custom_call.1} parent=1 // pred_region
      _
    $region25: #{tpu_custom_call.1} parent=1 // pred_fallthru
      _
    // Predicated region
    $region26: #{tpu_custom_call.1} parent=1 // pred_check
      _
    $region27: #{tpu_custom_call.1} parent=1 // pred_check_branch
      %37 = sbr.rel (0) target = $region29
    $region28: #{tpu_custom_call.1} parent=1 // pred_region
      _
    $region29: #{tpu_custom_call.1} parent=1 // pred_fallthru
      _
    // Predicated region
    $region30: #{tpu_custom_call.1} parent=1 // pred_check
      _
    $region31: #{tpu_custom_call.1} parent=1 // pred_check_branch
      %39 = sbr.rel (0) target = $region33
    $region32: #{tpu_custom_call.1} parent=1 // pred_region
      %40 = dma.done [#allocation3], 1024
    $region33: #{tpu_custom_call.1} parent=1 // pred_fallthru
      _
    %v42 = vld [vmem:[%s0] sm:$0xf]
    %v43 = vld [vmem:[%s1] sm:$0xf]
    %v44 = vld [vmem:[%s1 + $0x4] sm:$0xf]
    %v45 = vld [vmem:[%s1 + $0x8] sm:$0xf]
    %v46 = vld [vmem:[%s1 + $0xc] sm:$0xf]
    %v47 = vld [vmem:[%s1 + $0x10] sm:$0xf]
    %v48 = vld [vmem:[%s1 + $0x14] sm:$0xf]
    %v49 = vld [vmem:[%s1 + $0x18] sm:$0xf]
    %v50 = vld [vmem:[%s1 + $0x1c] sm:$0xf]
    %v51 = vld [vmem:[%s1 + $0x20] sm:$0xf]
    %v52 = vld [vmem:[%s1 + $0x24] sm:$0xf]
    %v53 = vld [vmem:[%s1 + $0x28] sm:$0xf]
    %v54 = vld [vmem:[%s1 + $0x2c] sm:$0xf]
    %v55 = vld [vmem:[%s1 + $0x30] sm:$0xf]
    %v56 = vld [vmem:[%s1 + $0x34] sm:$0xf]
    %v57 = vld [vmem:[%s1 + $0x38] sm:$0xf]
    %v58 = vld [vmem:[%s1 + $0x3c] sm:$0xf]
    %v59 = vld [vmem:[%s2] sm:$0x1]
    %v61 = vlaneseq
    %v62 = vshrl.u32 %v61, 7
    %v63 = vsub.s32 0, %v62
    %v64 = vrot.slane %v59, %v63
    %v82 = vunpack.c.l.b16 %v43
    %v83 = vunpack.c.l.b16 %v44
    %v84 = vunpack.c.l.b16 %v45
    %v85 = vunpack.c.l.b16 %v46
    %v86 = vunpack.c.l.b16 %v47
    %v87 = vunpack.c.l.b16 %v48
    %v88 = vunpack.c.l.b16 %v49
    %v89 = vunpack.c.l.b16 %v50
    %v90 = vunpack.c.l.b16 %v51
    %v91 = vunpack.c.l.b16 %v52
    %v92 = vunpack.c.l.b16 %v53
    %v93 = vunpack.c.l.b16 %v54
    %v94 = vunpack.c.l.b16 %v55
    %v95 = vunpack.c.l.b16 %v56
    %v96 = vunpack.c.l.b16 %v57
    %v97 = vunpack.c.l.b16 %v58
    %v98 = vpack.c.b16 %v83, %v82
    %v99 = vpack.c.b16 %v85, %v84
    %v100 = vpack.c.b16 %v87, %v86
    %v101 = vpack.c.b16 %v89, %v88
    %v102 = vpack.c.b16 %v91, %v90
    %v103 = vpack.c.b16 %v93, %v92
    %v104 = vpack.c.b16 %v95, %v94
    %v105 = vpack.c.b16 %v97, %v96
    %114 = vmatprep.subr.bf16.mxu0 0
    %115 = vmatpush1.bf16.msra.mxu0 %v98
    %116 = vmatprep.subr.bf16.mxu0 0
    %117 = vmatpush1.bf16.msra.mxu0 %v99
    %118 = vmatprep.subr.bf16.mxu0 0
    %119 = vmatpush1.bf16.msra.mxu0 %v100
    %120 = vmatprep.subr.bf16.mxu0 0
    %121 = vmatpush1.bf16.msra.mxu0 %v101
    %122 = vmatprep.subr.bf16.mxu0 0
    %123 = vmatpush1.bf16.msra.mxu0 %v102
    %124 = vmatprep.subr.bf16.mxu0 0
    %125 = vmatpush1.bf16.msra.mxu0 %v103
    %126 = vmatprep.subr.bf16.mxu0 0
    %127 = vmatpush1.bf16.msra.mxu0 %v104
    %128 = vmatprep.subr.bf16.mxu0 0
    %129 = vmatpush1.bf16.msra.mxu0 %v105
    %130 = vmatprep.subr.bf16.mxu0 0
    %131 = vmatpush1.bf16.msra.mxu0 0
    %132 = vmatprep.subr.bf16.mxu0 0
    %133 = vmatpush1.bf16.msra.mxu0 0
    %134 = vmatprep.subr.bf16.mxu0 0
    %135 = vmatpush1.bf16.msra.mxu0 0
    %136 = vmatprep.subr.bf16.mxu0 0
    %137 = vmatpush1.bf16.msra.mxu0 0
    %138 = vmatprep.subr.bf16.mxu0 0
    %139 = vmatpush1.bf16.msra.mxu0 0
    %140 = vmatprep.subr.bf16.mxu0 0
    %141 = vmatpush1.bf16.msra.mxu0 0
    %142 = vmatprep.subr.bf16.mxu0 0
    %143 = vmatpush1.bf16.msra.mxu0 0
    %144 = vmatprep.subr.bf16.mxu0 0
    %145 = vmatpush1.bf16.msra.mxu0 0
    %146 = vmatprep.mubr.bf16.mxu0 0
    %147 = vmatmul.mubr.bf16.gmra.mrb[0].mxu0 %v42
    %v148 = vpop.f32.mrb[0].mxu0
    %v149 = vadd.f32 %v64, %v148
    %v150 = vpop.f32.mrb[0].mxu0
    %v151 = vpop.f32.mrb[0].mxu0
    %v152 = vpop.f32.mrb[0].mxu0
    %153 = vdwg.mxu0
    %v154 = vmax.f32 %v149, 0.0
    %v155 = vpack.c.bf16 %v154, %v154
    %v156 = vld [vmem:[#allocation2] sm:$0xf]
    %v157 = vld [vmem:[#allocation2 + $0x4] sm:$0xf]
    %v158 = vld [vmem:[#allocation2 + $0x8] sm:$0xf]
    %v159 = vld [vmem:[#allocation2 + $0xc] sm:$0xf]
    %v160 = vld [vmem:[#allocation2 + $0x10] sm:$0xf]
    %v161 = vld [vmem:[#allocation2 + $0x14] sm:$0xf]
    %v162 = vld [vmem:[#allocation2 + $0x18] sm:$0xf]
    %v163 = vld [vmem:[#allocation2 + $0x1c] sm:$0xf]
    %v164 = vld [vmem:[#allocation2 + $0x20] sm:$0xf]
    %v165 = vld [vmem:[#allocation2 + $0x24] sm:$0xf]
    %v166 = vld [vmem:[#allocation2 + $0x28] sm:$0xf]
    %v167 = vld [vmem:[#allocation2 + $0x2c] sm:$0xf]
    %v168 = vld [vmem:[#allocation2 + $0x30] sm:$0xf]
    %v169 = vld [vmem:[#allocation2 + $0x34] sm:$0xf]
    %v170 = vld [vmem:[#allocation2 + $0x38] sm:$0xf]
    %v171 = vld [vmem:[#allocation2 + $0x3c] sm:$0xf]
    %v172 = vld [vmem:[%s4] sm:$0x1]
    %v174 = vlaneseq
    %v175 = vshrl.u32 %v174, 7
    %v176 = vsub.s32 0, %v175
    %v177 = vrot.slane %v172, %v176
    %v195 = vunpack.c.l.b16 %v156
    %v196 = vunpack.c.l.b16 %v157
    %v197 = vunpack.c.l.b16 %v158
    %v198 = vunpack.c.l.b16 %v159
    %v199 = vunpack.c.l.b16 %v160
    %v200 = vunpack.c.l.b16 %v161
    %v201 = vunpack.c.l.b16 %v162
    %v202 = vunpack.c.l.b16 %v163
    %v203 = vunpack.c.l.b16 %v164
    %v204 = vunpack.c.l.b16 %v165
    %v205 = vunpack.c.l.b16 %v166
    %v206 = vunpack.c.l.b16 %v167
    %v207 = vunpack.c.l.b16 %v168
    %v208 = vunpack.c.l.b16 %v169
    %v209 = vunpack.c.l.b16 %v170
    %v210 = vunpack.c.l.b16 %v171
    %v211 = vpack.c.b16 %v196, %v195
    %v212 = vpack.c.b16 %v198, %v197
    %v213 = vpack.c.b16 %v200, %v199
    %v214 = vpack.c.b16 %v202, %v201
    %v215 = vpack.c.b16 %v204, %v203
    %v216 = vpack.c.b16 %v206, %v205
    %v217 = vpack.c.b16 %v208, %v207
    %v218 = vpack.c.b16 %v210, %v209
    %227 = vmatprep.subr.bf16.mxu0 0
    %228 = vmatpush1.bf16.msra.mxu0 %v211
    %229 = vmatprep.subr.bf16.mxu0 0
    %230 = vmatpush1.bf16.msra.mxu0 %v212
    %231 = vmatprep.subr.bf16.mxu0 0
    %232 = vmatpush1.bf16.msra.mxu0 %v213
    %233 = vmatprep.subr.bf16.mxu0 0
    %234 = vmatpush1.bf16.msra.mxu0 %v214
    %235 = vmatprep.subr.bf16.mxu0 0
    %236 = vmatpush1.bf16.msra.mxu0 %v215
    %237 = vmatprep.subr.bf16.mxu0 0
    %238 = vmatpush1.bf16.msra.mxu0 %v216
    %239 = vmatprep.subr.bf16.mxu0 0
    %240 = vmatpush1.bf16.msra.mxu0 %v217
    %241 = vmatprep.subr.bf16.mxu0 0
    %242 = vmatpush1.bf16.msra.mxu0 %v218
    %243 = vmatprep.subr.bf16.mxu0 0
    %244 = vmatpush1.bf16.msra.mxu0 0
    %245 = vmatprep.subr.bf16.mxu0 0
    %246 = vmatpush1.bf16.msra.mxu0 0
    %247 = vmatprep.subr.bf16.mxu0 0
    %248 = vmatpush1.bf16.msra.mxu0 0
    %249 = vmatprep.subr.bf16.mxu0 0
    %250 = vmatpush1.bf16.msra.mxu0 0
    %251 = vmatprep.subr.bf16.mxu0 0
    %252 = vmatpush1.bf16.msra.mxu0 0
    %253 = vmatprep.subr.bf16.mxu0 0
    %254 = vmatpush1.bf16.msra.mxu0 0
    %255 = vmatprep.subr.bf16.mxu0 0
    %256 = vmatpush1.bf16.msra.mxu0 0
    %257 = vmatprep.subr.bf16.mxu0 0
    %258 = vmatpush1.bf16.msra.mxu0 0
    %259 = vmatprep.mubr.bf16.mxu0 0
    %260 = vmatmul.mubr.bf16.gmra.mrb[0].mxu0 %v155
    %v261 = vpop.f32.mrb[0].mxu0
    %v262 = vadd.f32 %v177, %v261
    %v263 = vpop.f32.mrb[0].mxu0
    %v264 = vpop.f32.mrb[0].mxu0
    %v265 = vpop.f32.mrb[0].mxu0
    %266 = vdwg.mxu0
    %v267 = vmax.f32 %v262, 0.0
    %v268 = vpack.c.bf16 %v267, %v267
    %v269 = vld [vmem:[%s5] sm:$0xf]
    %v270 = vld [vmem:[%s5 + $0x4] sm:$0xf]
    %v271 = vld [vmem:[%s5 + $0x8] sm:$0xf]
    %v272 = vld [vmem:[%s5 + $0xc] sm:$0xf]
    %v273 = vld [vmem:[%s5 + $0x10] sm:$0xf]
    %v274 = vld [vmem:[%s5 + $0x14] sm:$0xf]
    %v275 = vld [vmem:[%s5 + $0x18] sm:$0xf]
    %v276 = vld [vmem:[%s5 + $0x1c] sm:$0xf]
    %v277 = vld [vmem:[%s5 + $0x20] sm:$0xf]
    %v278 = vld [vmem:[%s5 + $0x24] sm:$0xf]
    %v279 = vld [vmem:[%s5 + $0x28] sm:$0xf]
    %v280 = vld [vmem:[%s5 + $0x2c] sm:$0xf]
    %v281 = vld [vmem:[%s5 + $0x30] sm:$0xf]
    %v282 = vld [vmem:[%s5 + $0x34] sm:$0xf]
    %v283 = vld [vmem:[%s5 + $0x38] sm:$0xf]
    %v284 = vld [vmem:[%s5 + $0x3c] sm:$0xf]
    %v285 = vld [vmem:[%s6] sm:$0x1]
    %v287 = vlaneseq
    %v288 = vshrl.u32 %v287, 7
    %v289 = vsub.s32 0, %v288
    %v290 = vrot.slane %v285, %v289
    %v308 = vunpack.c.l.b16 %v269
    %v309 = vunpack.c.l.b16 %v270
    %v310 = vunpack.c.l.b16 %v271
    %v311 = vunpack.c.l.b16 %v272
    %v312 = vunpack.c.l.b16 %v273
    %v313 = vunpack.c.l.b16 %v274
    %v314 = vunpack.c.l.b16 %v275
    %v315 = vunpack.c.l.b16 %v276
    %v316 = vunpack.c.l.b16 %v277
    %v317 = vunpack.c.l.b16 %v278
    %v318 = vunpack.c.l.b16 %v279
    %v319 = vunpack.c.l.b16 %v280
    %v320 = vunpack.c.l.b16 %v281
    %v321 = vunpack.c.l.b16 %v282
    %v322 = vunpack.c.l.b16 %v283
    %v323 = vunpack.c.l.b16 %v284
    %v324 = vpack.c.b16 %v309, %v308
    %v325 = vpack.c.b16 %v311, %v310
    %v326 = vpack.c.b16 %v313, %v312
    %v327 = vpack.c.b16 %v315, %v314
    %v328 = vpack.c.b16 %v317, %v316
    %v329 = vpack.c.b16 %v319, %v318
    %v330 = vpack.c.b16 %v321, %v320
    %v331 = vpack.c.b16 %v323, %v322
    %340 = vmatprep.subr.bf16.mxu0 0
    %341 = vmatpush1.bf16.msra.mxu0 %v324
    %342 = vmatprep.subr.bf16.mxu0 0
    %343 = vmatpush1.bf16.msra.mxu0 %v325
    %344 = vmatprep.subr.bf16.mxu0 0
    %345 = vmatpush1.bf16.msra.mxu0 %v326
    %346 = vmatprep.subr.bf16.mxu0 0
    %347 = vmatpush1.bf16.msra.mxu0 %v327
    %348 = vmatprep.subr.bf16.mxu0 0
    %349 = vmatpush1.bf16.msra.mxu0 %v328
    %350 = vmatprep.subr.bf16.mxu0 0
    %351 = vmatpush1.bf16.msra.mxu0 %v329
    %352 = vmatprep.subr.bf16.mxu0 0
    %353 = vmatpush1.bf16.msra.mxu0 %v330
    %354 = vmatprep.subr.bf16.mxu0 0
    %355 = vmatpush1.bf16.msra.mxu0 %v331
    %356 = vmatprep.subr.bf16.mxu0 0
    %357 = vmatpush1.bf16.msra.mxu0 0
    %358 = vmatprep.subr.bf16.mxu0 0
    %359 = vmatpush1.bf16.msra.mxu0 0
    %360 = vmatprep.subr.bf16.mxu0 0
    %361 = vmatpush1.bf16.msra.mxu0 0
    %362 = vmatprep.subr.bf16.mxu0 0
    %363 = vmatpush1.bf16.msra.mxu0 0
    %364 = vmatprep.subr.bf16.mxu0 0
    %365 = vmatpush1.bf16.msra.mxu0 0
    %366 = vmatprep.subr.bf16.mxu0 0
    %367 = vmatpush1.bf16.msra.mxu0 0
    %368 = vmatprep.subr.bf16.mxu0 0
    %369 = vmatpush1.bf16.msra.mxu0 0
    %370 = vmatprep.subr.bf16.mxu0 0
    %371 = vmatpush1.bf16.msra.mxu0 0
    %372 = vmatprep.mubr.bf16.mxu0 0
    %373 = vmatmul.mubr.bf16.gmra.mrb[0].mxu0 %v268
    %v374 = vpop.f32.mrb[0].mxu0
    %v375 = vadd.f32 %v290, %v374
    %v376 = vpop.f32.mrb[0].mxu0
    %v377 = vpop.f32.mrb[0].mxu0
    %v378 = vpop.f32.mrb[0].mxu0
    %379 = vdwg.mxu0
    %vm380 = vcmask 195584
    %381 = vst.msk [vmem:[#allocation5] sm:$0xff] %vm380, %v375
    // Predicated region
    $region34: #{tpu_custom_call.1} parent=1 // pred_check
      _
    $region35: #{tpu_custom_call.1} parent=1 // pred_check_branch
      %383 = sbr.rel (0) target = $region37
    $region36: #{tpu_custom_call.1} parent=1 // pred_region
      %s385 = ssub.s32 128, 128
      %386 = vsyncadd [#allocation4], %s385
      %s388 = sshll.u32 [#allocation5], 4
      %s389 = int_to_ptr.vmem [resolvable:$true] %s388
      %391 = dma.vmem_to_hbm [thread:$0]  %s389, 128, %s7, [#allocation4]
    $region37: #{tpu_custom_call.1} parent=1 // pred_fallthru
      _
    // Predicated region
    $region38: #{tpu_custom_call.1} parent=1 // pred_check
      _
    $region39: #{tpu_custom_call.1} parent=1 // pred_check_branch
      %393 = sbr.rel (0) target = $region41
    $region40: #{tpu_custom_call.1} parent=1 // pred_region
      %394 = dma.done [#allocation4], 128
    $region41: #{tpu_custom_call.1} parent=1 // pred_fallthru
      _
    %395 = vsyncpa [#allocation3], 1
    %396 = vsyncpa [#allocation4], 1

</llo_original>
